<compile_context>
chip_gen: v6e
topology: v6e:2x2x1
jax: 0.10.0
libtpu: 0.0.40
codegen_flags: <defaults>
</compile_context>

<pallas_src>
import math

import jax
import jax.numpy as jnp
from jax.experimental import pallas as pl
from jax.experimental.pallas import tpu as pltpu


def _choose_tiles(B, rows_io, rows_scratch, C, itemsize=4):
    """Pick (batch tile Bb, channel tile Ct) under a conservative VMEM budget.

    rows_io: time-rows of pipelined inputs/outputs per channel (single copy).
    rows_scratch: time-rows of the single-buffered VMEM scratch per channel.
    """
    if C % 128 == 0:
        Ct = 128
        while C % (Ct * 2) == 0 and rows_io * (Ct * 2) * itemsize <= (2 << 20):
            Ct *= 2
    else:
        Ct = C                                  # small C: whole channel dim in one block
    n_c = C // Ct

    def vmem_bytes(bb):
        # double-buffered IO blocks + single-buffered scratch (all f32-sized).
        return bb * Ct * itemsize * (2 * rows_io + rows_scratch)

    Bb = 1
    while (B % (Bb * 2) == 0
           and (B // (Bb * 2)) * n_c >= 2       # keep >= 2 grid blocks (megacore / pipeline)
           and vmem_bytes(Bb * 2) <= (16 << 20)):
        Bb *= 2
    return Bb, Ct


def make_creat_inps(moving_avg_kernels, pred_len, help_len, lin_w, lin_b):
    """Build Creat_inps.forward around one fused Pallas kernel.

    lin_w, lin_b: parameters of torch.nn.Linear(1, K) (weight[:, 0] and bias).
    """
    kernel_sizes = tuple(int(k) for k in moving_avg_kernels)
    K = len(kernel_sizes)
    fronts = tuple(k - 1 - (k - 1) // 2 for k in kernel_sizes)
    ends = tuple((k - 1) // 2 for k in kernel_sizes)
    E = max(ends)
    w_const = tuple(float(v) for v in jnp.asarray(lin_w, jnp.float32).reshape(K))
    b_const = tuple(float(v) for v in jnp.asarray(lin_b, jnp.float32).reshape(K))
    pred_len = int(pred_len)
    help_len = int(help_len)
    out_len = help_len + pred_len

    def creat_inps(batch_en_x, batch_den_x, batch_en_time, batch_den_time):
        B, L_en, C = batch_en_x.shape
        Bd, L, Cd = batch_den_x.shape
        if (Bd, Cd) != (B, C):
            raise ValueError("batch_en_x / batch_den_x batch or channel mismatch")
        if help_len > L:
            raise ValueError("help_len must be <= decoder sequence length")
        for k, f, e in zip(kernel_sizes, fronts, ends):
            if f > L - 1 or e > L - 1:
                raise ValueError(f"moving-avg kernel {k} too large for seq_len {L}")

        rows_io = L + L_en + 2 * out_len
        rows_scr = 2 * L + E
        Bb, Ct = _choose_tiles(B, rows_io, rows_scr, C)
        grid = (B // Bb, C // Ct)
        out_dtype = batch_den_x.dtype

        def kernel(den_ref, en_ref, seas_ref, trend_ref, se_ref):
            xv = den_ref[...].astype(jnp.float32)               # (Bb, L, Ct)

            # ---- inclusive prefix sum along time, with saturating edges ----
            # scratch layout along axis 1:  [0]*L  ++  S[0..L-1]  ++  [S[L-1]]*E
            se_ref[:, :L, :] = jnp.zeros((Bb, L, Ct), jnp.float32)
            se_ref[:, L:2 * L, :] = xv
            off = 1
            while off < L:                                       # Hillis-Steele scan
                cur = se_ref[:, L:2 * L, :]
                shifted = se_ref[:, L - off:2 * L - off, :]
                se_ref[:, L:2 * L, :] = cur + shifted
                off *= 2
            if E > 0:
                s_last = se_ref[:, 2 * L - 1:2 * L, :]
                se_ref[:, 2 * L:2 * L + E, :] = jnp.broadcast_to(
                    s_last, (Bb, E, Ct))

            # ---- replication-padding edge corrections (shared by all K) ----
            t_idx = jax.lax.broadcasted_iota(
                jnp.int32, (Bb, L, Ct), 1).astype(jnp.float32)
            x_first = jnp.broadcast_to(xv[:, 0:1, :], (Bb, L, Ct))
            x_last = jnp.broadcast_to(xv[:, L - 1:L, :], (Bb, L, Ct))

            # ---- mixture weights: softmax_k(x * w_k + b_k), in registers ----
            logits = [xv * w_const[i] + b_const[i] for i in range(K)]
            mx = logits[0]
            for i in range(1, K):
                mx = jnp.maximum(mx, logits[i])
            exps = [jnp.exp(lg - mx) for lg in logits]
            den = exps[0]
            for i in range(1, K):
                den = den + exps[i]
            inv_den = 1.0 / den

            # ---- weighted sum of the K moving averages ----
            trend = jnp.zeros((Bb, L, Ct), jnp.float32)
            for i, (k, f, e) in enumerate(zip(kernel_sizes, fronts, ends)):
                hi = se_ref[:, L + e:2 * L + e, :]               # S[min(t+e, L-1)]
                lo = se_ref[:, L - 1 - f:2 * L - 1 - f, :]       # S[t-f-1] (0 if t<=f)
                n_below = jnp.maximum(jnp.float32(f) - t_idx, 0.0)
                n_above = jnp.maximum(t_idx - jnp.float32(L - 1 - e), 0.0)
                win = hi - lo + n_below * x_first + n_above * x_last
                trend = trend + (win * jnp.float32(1.0 / k)) * (exps[i] * inv_den)

            season = xv - trend

            # ---- assemble seasonal_init / trend_init directly in the outputs ----
            en = en_ref[...].astype(jnp.float32)                 # (Bb, L_en, Ct)
            mean = jnp.mean(en, axis=1, keepdims=True)           # (Bb, 1, Ct)

            seas_ref[:, :help_len, :] = season[:, L - help_len:, :].astype(out_dtype)
            seas_ref[:, help_len:, :] = jnp.zeros((Bb, pred_len, Ct), out_dtype)
            trend_ref[:, :help_len, :] = trend[:, L - help_len:, :].astype(out_dtype)
            trend_ref[:, help_len:, :] = jnp.broadcast_to(
                mean, (Bb, pred_len, Ct)).astype(out_dtype)

        seasonal_init, trend_init = pl.pallas_call(
            kernel,
            out_shape=(jax.ShapeDtypeStruct((B, out_len, C), out_dtype),
                       jax.ShapeDtypeStruct((B, out_len, C), out_dtype)),
            grid=grid,
            in_specs=[
                pl.BlockSpec((Bb, L, Ct), lambda b, c: (b, 0, c)),      # batch_den_x
                pl.BlockSpec((Bb, L_en, Ct), lambda b, c: (b, 0, c)),   # batch_en_x
            ],
            out_specs=(
                pl.BlockSpec((Bb, out_len, Ct), lambda b, c: (b, 0, c)),
                pl.BlockSpec((Bb, out_len, Ct), lambda b, c: (b, 0, c)),
            ),
            scratch_shapes=[pltpu.VMEM((Bb, 2 * L + E, Ct), jnp.float32)],
            compiler_params=pltpu.CompilerParams(
                dimension_semantics=("parallel", "parallel"),
                vmem_limit_bytes=32 * 1024 * 1024,
            ),
        )(batch_den_x, batch_en_x)

        # batch_en_x / batch_en_time / batch_den_time are pure pass-throughs.
        return (batch_en_x, batch_en_time, seasonal_init,
                batch_den_time, trend_init)

    return jax.jit(creat_inps)


# ----------------------- pure-JAX reference (PyTorch mirror) -----------------------
def _moving_avg_ref(x, kernel_size, stride=1):
    front_reps = kernel_size - 1 - math.floor((kernel_size - 1) // 2)
    end_reps = math.floor((kernel_size - 1) // 2)
    front = jnp.repeat(x[:, 0:1, :], front_reps, axis=1)
    end = jnp.repeat(x[:, -1:, :], end_reps, axis=1)
    xp = jnp.concatenate([front, x, end], axis=1)
    L_out = (xp.shape[1] - kernel_size) // stride + 1
    return jnp.stack(
        [jnp.mean(xp[:, t * stride:t * stride + kernel_size, :], axis=1)
         for t in range(L_out)], axis=1)


def _series_decomp_multi_ref(x, kernel_sizes, lin_w, lin_b):
    mas = jnp.stack([_moving_avg_ref(x, k) for k in kernel_sizes], axis=-1)
    logits = x[..., None] * lin_w + lin_b            # Linear(1, K) per element
    weights = jax.nn.softmax(logits, axis=-1)
    trend = jnp.sum(mas * weights, axis=-1)
    return x - trend, trend


def _creat_inps_ref(batch_en_x, batch_den_x, batch_en_time, batch_den_time,
                    kernel_sizes, pred_len, help_len, lin_w, lin_b):
    season, trend = _series_decomp_multi_ref(batch_den_x, kernel_sizes,
                                             lin_w, lin_b)
    B, _, C = batch_en_x.shape
    mean = jnp.mean(batch_en_x, axis=1, keepdims=True)
    mean = jnp.broadcast_to(mean, (B, pred_len, C))
    zeros = jnp.zeros((B, pred_len, C), batch_en_x.dtype)
    seasonal_init = jnp.concatenate([season[:, -help_len:, :], zeros], axis=1)
    trend_init = jnp.concatenate([trend[:, -help_len:, :], mean], axis=1)
    return (batch_en_x, batch_en_time, seasonal_init,
            batch_den_time, trend_init)


if __name__ == "__main__":
    # Small Autoformer-style shapes: batch 2, encoder len 12, decoder len 16,
    # 8 channels, 4 time features, decomposition kernels [3, 5],
    # help (label) length 8, prediction length 4.
    B, en_len, den_len, C, n_time = 2, 12, 16, 8, 4
    kernel_sizes = [3, 5]
    pred_len, help_len = 4, 8

    key = jax.random.PRNGKey(0)
    k1, k2, k3, k4, k5, k6 = jax.random.split(key, 6)
    batch_en_x = jax.random.normal(k1, (B, en_len, C), jnp.float32)
    batch_den_x = jax.random.normal(k2, (B, den_len, C), jnp.float32)
    batch_en_time = jax.random.normal(k3, (B, en_len, n_time), jnp.float32)
    batch_den_time = jax.random.normal(k4, (B, den_len, n_time), jnp.float32)
    # torch.nn.Linear(1, K) parameters (weight[:, 0], bias)
    lin_w = 0.5 * jax.random.normal(k5, (len(kernel_sizes),), jnp.float32)
    lin_b = 0.5 * jax.random.normal(k6, (len(kernel_sizes),), jnp.float32)

    creat_inps = make_creat_inps(kernel_sizes, pred_len, help_len, lin_w, lin_b)
    outs = creat_inps(batch_en_x, batch_den_x, batch_en_time, batch_den_time)
    outs = jax.block_until_ready(outs)

    refs = _creat_inps_ref(batch_en_x, batch_den_x, batch_en_time,
                           batch_den_time, kernel_sizes, pred_len, help_len,
                           lin_w, lin_b)
    names = ("batch_en_x", "batch_en_time", "seasonal_init",
             "batch_den_time", "trend_init")
    for name, got, want in zip(names, outs, refs):
        assert got.shape == want.shape, (name, got.shape, want.shape)
        err = float(jnp.max(jnp.abs(got.astype(jnp.float32) -
                                    want.astype(jnp.float32))))
        assert err <= 1e-4, (name, err)

    print("KERNEL_OK")
</pallas_src>

<mosaic_0001>
module attributes {stable_mosaic.version = 11 : i64} {
  func.func @kernel(%arg0: i32, %arg1: i32, %arg2: memref<1x16x8xf32, #tpu.memory_space<vmem>>, %arg3: memref<1x12x8xf32, #tpu.memory_space<vmem>>, %arg4: memref<1x12x8xf32, #tpu.memory_space<vmem>>, %arg5: memref<1x12x8xf32, #tpu.memory_space<vmem>>, %arg6: memref<1x34x8xf32, #tpu.memory_space<vmem>>) attributes {dimension_semantics = [#tpu.dimension_semantics<parallel>, #tpu.dimension_semantics<parallel>], iteration_bounds = array<i64: 2, 1>, scalar_prefetch = 0 : i64, scratch_operands = 1 : i64, tpu.core_type = #tpu.core_type<tc>, window_params = [{transform_indices = @transform_0, window_bounds = array<i64: 1, 16, 8>}, {transform_indices = @transform_1, window_bounds = array<i64: 1, 12, 8>}, {transform_indices = @transform_2, window_bounds = array<i64: 1, 12, 8>}, {transform_indices = @transform_3, window_bounds = array<i64: 1, 12, 8>}]} {
    %c0 = arith.constant 0 : index
    %c0_0 = arith.constant 0 : index
    %c0_1 = arith.constant 0 : index
    %0 = vector.load %arg2[%c0, %c0_0, %c0_1] : memref<1x16x8xf32, #tpu.memory_space<vmem>>, vector<1x16x8xf32>
    %cst = arith.constant 0.000000e+00 : f32
    %1 = vector.broadcast %cst : f32 to vector<1x16x8xf32>
    %c0_2 = arith.constant 0 : index
    %c0_3 = arith.constant 0 : index
    %c0_4 = arith.constant 0 : index
    %2 = vector.load %arg6[%c0_2, %c0_3, %c0_4] : memref<1x34x8xf32, #tpu.memory_space<vmem>>, vector<1x16x8xf32>
    tpu.vector_store %arg6[%c0_2, %c0_3, %c0_4], %1 {strides = array<i32>} : memref<1x34x8xf32, #tpu.memory_space<vmem>>, vector<1x16x8xf32>,
    %c0_5 = arith.constant 0 : index
    %c16 = arith.constant 16 : index
    %c0_6 = arith.constant 0 : index
    %3 = vector.load %arg6[%c0_5, %c16, %c0_6] : memref<1x34x8xf32, #tpu.memory_space<vmem>>, vector<1x16x8xf32>
    tpu.vector_store %arg6[%c0_5, %c16, %c0_6], %0 {strides = array<i32>} : memref<1x34x8xf32, #tpu.memory_space<vmem>>, vector<1x16x8xf32>,
    %c0_7 = arith.constant 0 : index
    %c16_8 = arith.constant 16 : index
    %c0_9 = arith.constant 0 : index
    %4 = vector.load %arg6[%c0_7, %c16_8, %c0_9] : memref<1x34x8xf32, #tpu.memory_space<vmem>>, vector<1x16x8xf32>
    %c0_10 = arith.constant 0 : index
    %c15 = arith.constant 15 : index
    %c0_11 = arith.constant 0 : index
    %5 = vector.load %arg6[%c0_10, %c15, %c0_11] : memref<1x34x8xf32, #tpu.memory_space<vmem>>, vector<1x16x8xf32>
    %6 = arith.addf %4, %5 : vector<1x16x8xf32>
    %c0_12 = arith.constant 0 : index
    %c16_13 = arith.constant 16 : index
    %c0_14 = arith.constant 0 : index
    %7 = vector.load %arg6[%c0_12, %c16_13, %c0_14] : memref<1x34x8xf32, #tpu.memory_space<vmem>>, vector<1x16x8xf32>
    tpu.vector_store %arg6[%c0_12, %c16_13, %c0_14], %6 {strides = array<i32>} : memref<1x34x8xf32, #tpu.memory_space<vmem>>, vector<1x16x8xf32>,
    %c0_15 = arith.constant 0 : index
    %c16_16 = arith.constant 16 : index
    %c0_17 = arith.constant 0 : index
    %8 = vector.load %arg6[%c0_15, %c16_16, %c0_17] : memref<1x34x8xf32, #tpu.memory_space<vmem>>, vector<1x16x8xf32>
    %c0_18 = arith.constant 0 : index
    %c14 = arith.constant 14 : index
    %c0_19 = arith.constant 0 : index
    %9 = vector.load %arg6[%c0_18, %c14, %c0_19] : memref<1x34x8xf32, #tpu.memory_space<vmem>>, vector<1x16x8xf32>
    %10 = arith.addf %8, %9 : vector<1x16x8xf32>
    %c0_20 = arith.constant 0 : index
    %c16_21 = arith.constant 16 : index
    %c0_22 = arith.constant 0 : index
    %11 = vector.load %arg6[%c0_20, %c16_21, %c0_22] : memref<1x34x8xf32, #tpu.memory_space<vmem>>, vector<1x16x8xf32>
    tpu.vector_store %arg6[%c0_20, %c16_21, %c0_22], %10 {strides = array<i32>} : memref<1x34x8xf32, #tpu.memory_space<vmem>>, vector<1x16x8xf32>,
    %c0_23 = arith.constant 0 : index
    %c16_24 = arith.constant 16 : index
    %c0_25 = arith.constant 0 : index
    %12 = vector.load %arg6[%c0_23, %c16_24, %c0_25] : memref<1x34x8xf32, #tpu.memory_space<vmem>>, vector<1x16x8xf32>
    %c0_26 = arith.constant 0 : index
    %c12 = arith.constant 12 : index
    %c0_27 = arith.constant 0 : index
    %13 = vector.load %arg6[%c0_26, %c12, %c0_27] : memref<1x34x8xf32, #tpu.memory_space<vmem>>, vector<1x16x8xf32>
    %14 = arith.addf %12, %13 : vector<1x16x8xf32>
    %c0_28 = arith.constant 0 : index
    %c16_29 = arith.constant 16 : index
    %c0_30 = arith.constant 0 : index
    %15 = vector.load %arg6[%c0_28, %c16_29, %c0_30] : memref<1x34x8xf32, #tpu.memory_space<vmem>>, vector<1x16x8xf32>
    tpu.vector_store %arg6[%c0_28, %c16_29, %c0_30], %14 {strides = array<i32>} : memref<1x34x8xf32, #tpu.memory_space<vmem>>, vector<1x16x8xf32>,
    %c0_31 = arith.constant 0 : index
    %c16_32 = arith.constant 16 : index
    %c0_33 = arith.constant 0 : index
    %16 = vector.load %arg6[%c0_31, %c16_32, %c0_33] : memref<1x34x8xf32, #tpu.memory_space<vmem>>, vector<1x16x8xf32>
    %c0_34 = arith.constant 0 : index
    %c8 = arith.constant 8 : index
    %c0_35 = arith.constant 0 : index
    %17 = vector.load %arg6[%c0_34, %c8, %c0_35] : memref<1x34x8xf32, #tpu.memory_space<vmem>>, vector<1x16x8xf32>
    %18 = arith.addf %16, %17 : vector<1x16x8xf32>
    %c0_36 = arith.constant 0 : index
    %c16_37 = arith.constant 16 : index
    %c0_38 = arith.constant 0 : index
    %19 = vector.load %arg6[%c0_36, %c16_37, %c0_38] : memref<1x34x8xf32, #tpu.memory_space<vmem>>, vector<1x16x8xf32>
    tpu.vector_store %arg6[%c0_36, %c16_37, %c0_38], %18 {strides = array<i32>} : memref<1x34x8xf32, #tpu.memory_space<vmem>>, vector<1x16x8xf32>,
    %c0_39 = arith.constant 0 : index
    %c31 = arith.constant 31 : index
    %c0_40 = arith.constant 0 : index
    %20 = vector.load %arg6[%c0_39, %c31, %c0_40] : memref<1x34x8xf32, #tpu.memory_space<vmem>>, vector<1x1x8xf32>
    %21 = vector.shape_cast %20 : vector<1x1x8xf32> to vector<1x1x8xf32>
    %22 = vector.broadcast %21 : vector<1x1x8xf32> to vector<1x2x8xf32>
    %c0_41 = arith.constant 0 : index
    %c32 = arith.constant 32 : index
    %c0_42 = arith.constant 0 : index
    %23 = vector.load %arg6[%c0_41, %c32, %c0_42] : memref<1x34x8xf32, #tpu.memory_space<vmem>>, vector<1x2x8xf32>
    tpu.vector_store %arg6[%c0_41, %c32, %c0_42], %22 {strides = array<i32>} : memref<1x34x8xf32, #tpu.memory_space<vmem>>, vector<1x2x8xf32>,
    %24 = tpu.iota {dimensions = array<i32: 1>} : vector<1x16x8xi32>
    %25 = arith.sitofp %24 : vector<1x16x8xi32> to vector<1x16x8xf32>
    %26 = vector.extract_strided_slice %0 {offsets = [0, 0, 0], sizes = [1, 1, 8], strides = [1, 1, 1]} : vector<1x16x8xf32> to vector<1x1x8xf32>
    %27 = vector.shape_cast %26 : vector<1x1x8xf32> to vector<1x1x8xf32>
    %28 = vector.broadcast %27 : vector<1x1x8xf32> to vector<1x16x8xf32>
    %29 = vector.extract_strided_slice %0 {offsets = [0, 15, 0], sizes = [1, 1, 8], strides = [1, 1, 1]} : vector<1x16x8xf32> to vector<1x1x8xf32>
    %30 = vector.shape_cast %29 : vector<1x1x8xf32> to vector<1x1x8xf32>
    %31 = vector.broadcast %30 : vector<1x1x8xf32> to vector<1x16x8xf32>
    %cst_43 = arith.constant -0.510442674 : f32
    %32 = vector.broadcast %cst_43 : f32 to vector<1x16x8xf32>
    %33 = arith.mulf %0, %32 : vector<1x16x8xf32>
    %cst_44 = arith.constant 0.318688571 : f32
    %34 = vector.broadcast %cst_44 : f32 to vector<1x16x8xf32>
    %35 = arith.addf %33, %34 : vector<1x16x8xf32>
    %cst_45 = arith.constant 0.304903835 : f32
    %36 = vector.broadcast %cst_45 : f32 to vector<1x16x8xf32>
    %37 = arith.mulf %0, %36 : vector<1x16x8xf32>
    %cst_46 = arith.constant 0.159795776 : f32
    %38 = vector.broadcast %cst_46 : f32 to vector<1x16x8xf32>
    %39 = arith.addf %37, %38 : vector<1x16x8xf32>
    %40 = arith.maximumf %35, %39 : vector<1x16x8xf32>
    %41 = arith.subf %35, %40 : vector<1x16x8xf32>
    %42 = math.exp %41 : vector<1x16x8xf32>
    %43 = arith.subf %39, %40 : vector<1x16x8xf32>
    %44 = math.exp %43 : vector<1x16x8xf32>
    %45 = arith.addf %42, %44 : vector<1x16x8xf32>
    %cst_47 = arith.constant 1.000000e+00 : f32
    %46 = vector.broadcast %cst_47 : f32 to vector<1x16x8xf32>
    %47 = arith.divf %46, %45 : vector<1x16x8xf32>
    %cst_48 = arith.constant 0.000000e+00 : f32
    %48 = vector.broadcast %cst_48 : f32 to vector<1x16x8xf32>
    %c0_49 = arith.constant 0 : index
    %c17 = arith.constant 17 : index
    %c0_50 = arith.constant 0 : index
    %49 = vector.load %arg6[%c0_49, %c17, %c0_50] : memref<1x34x8xf32, #tpu.memory_space<vmem>>, vector<1x16x8xf32>
    %c0_51 = arith.constant 0 : index
    %c14_52 = arith.constant 14 : index
    %c0_53 = arith.constant 0 : index
    %50 = vector.load %arg6[%c0_51, %c14_52, %c0_53] : memref<1x34x8xf32, #tpu.memory_space<vmem>>, vector<1x16x8xf32>
    %cst_54 = arith.constant 1.000000e+00 : f32
    %51 = vector.broadcast %cst_54 : f32 to vector<1x16x8xf32>
    %52 = arith.subf %51, %25 : vector<1x16x8xf32>
    %cst_55 = arith.constant 0.000000e+00 : f32
    %53 = vector.broadcast %cst_55 : f32 to vector<1x16x8xf32>
    %54 = arith.maximumf %52, %53 : vector<1x16x8xf32>
    %cst_56 = arith.constant 1.400000e+01 : f32
    %55 = vector.broadcast %cst_56 : f32 to vector<1x16x8xf32>
    %56 = arith.subf %25, %55 : vector<1x16x8xf32>
    %cst_57 = arith.constant 0.000000e+00 : f32
    %57 = vector.broadcast %cst_57 : f32 to vector<1x16x8xf32>
    %58 = arith.maximumf %56, %57 : vector<1x16x8xf32>
    %59 = arith.subf %49, %50 : vector<1x16x8xf32>
    %60 = arith.mulf %54, %28 : vector<1x16x8xf32>
    %61 = arith.addf %59, %60 : vector<1x16x8xf32>
    %62 = arith.mulf %58, %31 : vector<1x16x8xf32>
    %63 = arith.addf %61, %62 : vector<1x16x8xf32>
    %cst_58 = arith.constant 0.333333343 : f32
    %64 = vector.broadcast %cst_58 : f32 to vector<1x16x8xf32>
    %65 = arith.mulf %63, %64 : vector<1x16x8xf32>
    %66 = arith.mulf %42, %47 : vector<1x16x8xf32>
    %67 = arith.mulf %65, %66 : vector<1x16x8xf32>
    %68 = arith.addf %48, %67 : vector<1x16x8xf32>
    %c0_59 = arith.constant 0 : index
    %c18 = arith.constant 18 : index
    %c0_60 = arith.constant 0 : index
    %69 = vector.load %arg6[%c0_59, %c18, %c0_60] : memref<1x34x8xf32, #tpu.memory_space<vmem>>, vector<1x16x8xf32>
    %c0_61 = arith.constant 0 : index
    %c13 = arith.constant 13 : index
    %c0_62 = arith.constant 0 : index
    %70 = vector.load %arg6[%c0_61, %c13, %c0_62] : memref<1x34x8xf32, #tpu.memory_space<vmem>>, vector<1x16x8xf32>
    %cst_63 = arith.constant 2.000000e+00 : f32
    %71 = vector.broadcast %cst_63 : f32 to vector<1x16x8xf32>
    %72 = arith.subf %71, %25 : vector<1x16x8xf32>
    %cst_64 = arith.constant 0.000000e+00 : f32
    %73 = vector.broadcast %cst_64 : f32 to vector<1x16x8xf32>
    %74 = arith.maximumf %72, %73 : vector<1x16x8xf32>
    %cst_65 = arith.constant 1.300000e+01 : f32
    %75 = vector.broadcast %cst_65 : f32 to vector<1x16x8xf32>
    %76 = arith.subf %25, %75 : vector<1x16x8xf32>
    %cst_66 = arith.constant 0.000000e+00 : f32
    %77 = vector.broadcast %cst_66 : f32 to vector<1x16x8xf32>
    %78 = arith.maximumf %76, %77 : vector<1x16x8xf32>
    %79 = arith.subf %69, %70 : vector<1x16x8xf32>
    %80 = arith.mulf %74, %28 : vector<1x16x8xf32>
    %81 = arith.addf %79, %80 : vector<1x16x8xf32>
    %82 = arith.mulf %78, %31 : vector<1x16x8xf32>
    %83 = arith.addf %81, %82 : vector<1x16x8xf32>
    %cst_67 = arith.constant 2.000000e-01 : f32
    %84 = vector.broadcast %cst_67 : f32 to vector<1x16x8xf32>
    %85 = arith.mulf %83, %84 : vector<1x16x8xf32>
    %86 = arith.mulf %44, %47 : vector<1x16x8xf32>
    %87 = arith.mulf %85, %86 : vector<1x16x8xf32>
    %88 = arith.addf %68, %87 : vector<1x16x8xf32>
    %89 = arith.subf %0, %88 : vector<1x16x8xf32>
    %c0_68 = arith.constant 0 : index
    %c0_69 = arith.constant 0 : index
    %c0_70 = arith.constant 0 : index
    %90 = vector.load %arg3[%c0_68, %c0_69, %c0_70] : memref<1x12x8xf32, #tpu.memory_space<vmem>>, vector<1x12x8xf32>
    %cst_71 = arith.constant dense<0.000000e+00> : vector<1x8xf32>
    %91 = vector.multi_reduction <add>, %90, %cst_71 [1] : vector<1x12x8xf32> to vector<1x8xf32>
    %92 = vector.shape_cast %91 : vector<1x8xf32> to vector<1x1x8xf32>
    %cst_72 = arith.constant 1.200000e+01 : f32
    %93 = vector.broadcast %cst_72 : f32 to vector<1x1x8xf32>
    %94 = arith.divf %92, %93 : vector<1x1x8xf32>
    %95 = vector.extract_strided_slice %89 {offsets = [0, 8, 0], sizes = [1, 8, 8], strides = [1, 1, 1]} : vector<1x16x8xf32> to vector<1x8x8xf32>
    %c0_73 = arith.constant 0 : index
    %c0_74 = arith.constant 0 : index
    %c0_75 = arith.constant 0 : index
    %96 = vector.load %arg4[%c0_73, %c0_74, %c0_75] : memref<1x12x8xf32, #tpu.memory_space<vmem>>, vector<1x8x8xf32>
    tpu.vector_store %arg4[%c0_73, %c0_74, %c0_75], %95 {strides = array<i32>} : memref<1x12x8xf32, #tpu.memory_space<vmem>>, vector<1x8x8xf32>,
    %cst_76 = arith.constant 0.000000e+00 : f32
    %97 = vector.broadcast %cst_76 : f32 to vector<1x4x8xf32>
    %c0_77 = arith.constant 0 : index
    %c8_78 = arith.constant 8 : index
    %c0_79 = arith.constant 0 : index
    %98 = vector.load %arg4[%c0_77, %c8_78, %c0_79] : memref<1x12x8xf32, #tpu.memory_space<vmem>>, vector<1x4x8xf32>
    tpu.vector_store %arg4[%c0_77, %c8_78, %c0_79], %97 {strides = array<i32>} : memref<1x12x8xf32, #tpu.memory_space<vmem>>, vector<1x4x8xf32>,
    %99 = vector.extract_strided_slice %88 {offsets = [0, 8, 0], sizes = [1, 8, 8], strides = [1, 1, 1]} : vector<1x16x8xf32> to vector<1x8x8xf32>
    %c0_80 = arith.constant 0 : index
    %c0_81 = arith.constant 0 : index
    %c0_82 = arith.constant 0 : index
    %100 = vector.load %arg5[%c0_80, %c0_81, %c0_82] : memref<1x12x8xf32, #tpu.memory_space<vmem>>, vector<1x8x8xf32>
    tpu.vector_store %arg5[%c0_80, %c0_81, %c0_82], %99 {strides = array<i32>} : memref<1x12x8xf32, #tpu.memory_space<vmem>>, vector<1x8x8xf32>,
    %101 = vector.shape_cast %94 : vector<1x1x8xf32> to vector<1x1x8xf32>
    %102 = vector.broadcast %101 : vector<1x1x8xf32> to vector<1x4x8xf32>
    %c0_83 = arith.constant 0 : index
    %c8_84 = arith.constant 8 : index
    %c0_85 = arith.constant 0 : index
    %103 = vector.load %arg5[%c0_83, %c8_84, %c0_85] : memref<1x12x8xf32, #tpu.memory_space<vmem>>, vector<1x4x8xf32>
    tpu.vector_store %arg5[%c0_83, %c8_84, %c0_85], %102 {strides = array<i32>} : memref<1x12x8xf32, #tpu.memory_space<vmem>>, vector<1x4x8xf32>,
    return
  }
  func.func @transform_0(%arg0: i32, %arg1: i32) -> (i32, i32, i32) {
    %c0_i32 = arith.constant 0 : i32
    %c0_i32_0 = arith.constant 0 : i32
    return %arg0, %c0_i32, %arg1 : i32, i32, i32
  }
  func.func @transform_1(%arg0: i32, %arg1: i32) -> (i32, i32, i32) {
    %c0_i32 = arith.constant 0 : i32
    %c0_i32_0 = arith.constant 0 : i32
    return %arg0, %c0_i32, %arg1 : i32, i32, i32
  }
  func.func @transform_2(%arg0: i32, %arg1: i32) -> (i32, i32, i32) {
    %c0_i32 = arith.constant 0 : i32
    %c0_i32_0 = arith.constant 0 : i32
    return %arg0, %c0_i32, %arg1 : i32, i32, i32
  }
  func.func @transform_3(%arg0: i32, %arg1: i32) -> (i32, i32, i32) {
    %c0_i32 = arith.constant 0 : i32
    %c0_i32_0 = arith.constant 0 : i32
    return %arg0, %c0_i32, %arg1 : i32, i32, i32
  }
}

</mosaic_0001>

<llo_original>
// kernel: creat_inps.1
$region0: #{creat_inps.1}
  #allocation0 [shape = 'u32[]', space=smem, size = 0x4, offset = 0x4, fixed_abs, tag = 'smem constant byte address 0x4 - core index']
  #allocation1 [shape = 'u32[144,128]{1,0:T(1,128)}', space=vmem, size = 0x12000, scoped, tag = 'internal scratch']
  #allocation2 [shape = 'f32[1,34,8]{2,1,0:T(8,128)}', space=vmem, size = 0x5000, scoped, tag = 'scratch operand']
  %s0 = inlined_call_operand.vmem [shape: f32[2,16,8], index: 0, kind: input, shape index: {}]
  %s1 = inlined_call_operand.vmem [shape: f32[2,12,8], index: 1, kind: input, shape index: {}]
  %s2 = inlined_call_operand.vmem [shape: f32[2,12,8], index: 2, kind: output, shape index: {0}]
  %s3 = inlined_call_operand.vmem [shape: f32[2,12,8], index: 3, kind: output, shape index: {1}]
  %4 = xla_tuple %s2, %s3
  %s5 = sld [smem:[#allocation0]]
  $region49: #{creat_inps.1} parent=0
    _
  %s7 = ssub.s32 1, %s5
  %s8 = scalar_select 0, %s7, %s5
  loop: start=0, step=1, limit=4
  $region2: #{creat_inps.1} parent=0 // loop_pre_header
    _
  $region3: #{creat_inps.1} parent=0 // loop_header
    %s10 = sphi 0, %s14
    %p11 = scmp.ge.s32.totalorder %s10, 4
    %s17 = sphi 0, %s29
    %s18 = sphi 0, %s25
    %s19 = sphi 0, %s17
    %s20 = sphi 0, %s18
    %s21 = sphi 0, %s19
    %s22 = sphi 0, %s20
    %s34 = sphi 0, %s36
    %s37 = sphi 0, %s34
    %s38 = sphi 0, %s37
    %s54 = sphi 0, %s38
    %s62 = sphi 0, %s64
    %s65 = sphi 0, %s62
    %s66 = sphi 0, %s65
    %s82 = sphi 0, %s66
    %s90 = sphi 0, %s92
    %s93 = sphi 0, %s90
    %s94 = sphi 0, %s93
    %s110 = sphi 0, %s94
    %s118 = sphi 0, %s120
    %s121 = sphi 0, %s118
    %s122 = sphi 0, %s121
    %s138 = sphi 0, %s122
  $region4: #{creat_inps.1} parent=0 // loop_header_branch
    %13 = sbr.rel (%p11) target = $region8
  $region5: #{creat_inps.1} parent=0 // loop_body
    %s15 = ssub.s32 %s10, 1
    %s16 = ssub.s32 %s10, 2
    %s23 = sadd.s32 1, %s18
    %p24 = scmp.ge.s32.totalorder %s23, 1
    %s25 = scalar_select %p24, 0, %s23
    %s26 = sadd.s32 1, %s17
    %s27 = scalar_select %p24, %s26, %s17
    %p28 = scmp.ge.s32.totalorder %s27, 2
    %s29 = scalar_select %p28, 0, %s27
    %s30 = ssub.s32 %s17, %s29
    %s31 = ssub.s32 %s18, %s25
    %s32 = sor.u32 %s30, %s31
    %p33 = scmp.eq.s32.totalorder %s32, 0
    %s35 = sadd.s32 %s34, 1
    %s36 = scalar_select %p33, %s34, %s35
    %p39 = pneg %p33
    %p40 = scmp.eq.s32.totalorder %s10, 1
    %p41 = por %p39, %p40
    %p42 = scmp.ne.s32.totalorder %s34, %s37
    %p43 = scmp.eq.s32.totalorder %s10, 0
    %p44 = por %p42, %p43
    %p45 = scmp.ne.s32.totalorder %s34, %s37
    %p46 = scmp.eq.s32.totalorder %s15, 1
    %p47 = por %p45, %p46
    %p48 = scmp.ne.s32.totalorder %s37, %s38
    %p49 = scmp.eq.s32.totalorder %s15, 0
    %p50 = por %p48, %p49
    %p51 = scmp.ne.s32.totalorder %s37, %s38
    %p52 = scmp.eq.s32.totalorder %s16, 1
    %p53 = por %p51, %p52
    %p55 = scmp.ne.s32.totalorder %s38, %s54
    %p56 = scmp.eq.s32.totalorder %s16, 0
    %p57 = por %p55, %p56
    %s58 = ssub.s32 %s17, %s29
    %s59 = ssub.s32 %s18, %s25
    %s60 = sor.u32 %s58, %s59
    %p61 = scmp.eq.s32.totalorder %s60, 0
    %s63 = sadd.s32 %s62, 1
    %s64 = scalar_select %p61, %s62, %s63
    %p67 = pneg %p61
    %p68 = scmp.eq.s32.totalorder %s10, 1
    %p69 = por %p67, %p68
    %p70 = scmp.ne.s32.totalorder %s62, %s65
    %p71 = scmp.eq.s32.totalorder %s10, 0
    %p72 = por %p70, %p71
    %p73 = scmp.ne.s32.totalorder %s62, %s65
    %p74 = scmp.eq.s32.totalorder %s15, 1
    %p75 = por %p73, %p74
    %p76 = scmp.ne.s32.totalorder %s65, %s66
    %p77 = scmp.eq.s32.totalorder %s15, 0
    %p78 = por %p76, %p77
    %p79 = scmp.ne.s32.totalorder %s65, %s66
    %p80 = scmp.eq.s32.totalorder %s16, 1
    %p81 = por %p79, %p80
    %p83 = scmp.ne.s32.totalorder %s66, %s82
    %p84 = scmp.eq.s32.totalorder %s16, 0
    %p85 = por %p83, %p84
    %s86 = ssub.s32 %s17, %s29
    %s87 = ssub.s32 %s18, %s25
    %s88 = sor.u32 %s86, %s87
    %p89 = scmp.eq.s32.totalorder %s88, 0
    %s91 = sadd.s32 %s90, 1
    %s92 = scalar_select %p89, %s90, %s91
    %p95 = pneg %p89
    %p96 = scmp.eq.s32.totalorder %s10, 1
    %p97 = por %p95, %p96
    %p98 = scmp.ne.s32.totalorder %s90, %s93
    %p99 = scmp.eq.s32.totalorder %s10, 0
    %p100 = por %p98, %p99
    %p101 = scmp.ne.s32.totalorder %s90, %s93
    %p102 = scmp.eq.s32.totalorder %s15, 1
    %p103 = por %p101, %p102
    %p104 = scmp.ne.s32.totalorder %s93, %s94
    %p105 = scmp.eq.s32.totalorder %s15, 0
    %p106 = por %p104, %p105
    %p107 = scmp.ne.s32.totalorder %s93, %s94
    %p108 = scmp.eq.s32.totalorder %s16, 1
    %p109 = por %p107, %p108
    %p111 = scmp.ne.s32.totalorder %s94, %s110
    %p112 = scmp.eq.s32.totalorder %s16, 0
    %p113 = por %p111, %p112
    %s114 = ssub.s32 %s17, %s29
    %s115 = ssub.s32 %s18, %s25
    %s116 = sor.u32 %s114, %s115
    %p117 = scmp.eq.s32.totalorder %s116, 0
    %s119 = sadd.s32 %s118, 1
    %s120 = scalar_select %p117, %s118, %s119
    %p123 = pneg %p117
    %p124 = scmp.eq.s32.totalorder %s10, 1
    %p125 = por %p123, %p124
    %p126 = scmp.ne.s32.totalorder %s118, %s121
    %p127 = scmp.eq.s32.totalorder %s10, 0
    %p128 = por %p126, %p127
    %p129 = scmp.ne.s32.totalorder %s118, %s121
    %p130 = scmp.eq.s32.totalorder %s15, 1
    %p131 = por %p129, %p130
    %p132 = scmp.ne.s32.totalorder %s121, %s122
    %p133 = scmp.eq.s32.totalorder %s15, 0
    %p134 = por %p132, %p133
    %p135 = scmp.ne.s32.totalorder %s121, %s122
    %p136 = scmp.eq.s32.totalorder %s16, 1
    %p137 = por %p135, %p136
    %p139 = scmp.ne.s32.totalorder %s122, %s138
    %p140 = scmp.eq.s32.totalorder %s16, 0
    %p141 = por %p139, %p140
    %p142 = scmp.le.s32.totalorder 1, %s10
    %p143 = scmp.lt.s32.totalorder %s10, 3
    %p144 = pnand %p142, %p143
    %p145 = pneg %p144
    // Predicated region
    $region9: #{creat_inps.1} parent=5 // pred_check
      _
    $region10: #{creat_inps.1} parent=5 // pred_check_branch
      %147 = sbr.rel (%p144) target = $region12
    $region11: #{creat_inps.1} parent=5 // pred_region
      %s148 = ssub.s32 %s10, 1
    $region12: #{creat_inps.1} parent=5 // pred_fallthru
      _
    %p149 = scmp.lt.s32.totalorder %s10, 2
    // Predicated region
    $region13: #{creat_inps.1} parent=5 // pred_check
      %p150 = pneg %p149
    $region14: #{creat_inps.1} parent=5 // pred_check_branch
      %152 = sbr.rel (%p150) target = $region16
    $region15: #{creat_inps.1} parent=5 // pred_region
      // Predicated region
      $region17: #{creat_inps.1} parent=15 // pred_check
        %p153 = pneg %p44
      $region18: #{creat_inps.1} parent=15 // pred_check_branch
        %155 = sbr.rel (%p153) target = $region20
      $region19: #{creat_inps.1} parent=15 // pred_region
        %p156 = scmp.lt.s32.totalorder %s17, 1
        %s157 = scalar_select %p156, %s17, 1
        %p158 = scmp.lt.s32.totalorder %s18, 0
        %s159 = scalar_select %p158, %s18, 0
        %s160 = smul.addr %s157, 2
        %s161 = sadd.s32 %s159, %s160
        %s162 = smul.addr %s161, 8
        %s163 = scalar_lea.vmem %s0, %s162
      $region20: #{creat_inps.1} parent=15 // pred_fallthru
        _
      // Predicated region
      $region21: #{creat_inps.1} parent=15 // pred_check
        %p164 = pneg %p72
      $region22: #{creat_inps.1} parent=15 // pred_check_branch
        %166 = sbr.rel (%p164) target = $region24
      $region23: #{creat_inps.1} parent=15 // pred_region
        %p167 = scmp.lt.s32.totalorder %s17, 1
        %s168 = scalar_select %p167, %s17, 1
        %p169 = scmp.lt.s32.totalorder %s18, 0
        %s170 = scalar_select %p169, %s18, 0
        %s171 = smul.addr %s168, 2
        %s172 = sadd.s32 %s170, %s171
        %s173 = smul.addr %s172, 8
        %s174 = scalar_lea.vmem %s1, %s173
      $region24: #{creat_inps.1} parent=15 // pred_fallthru
        _
    $region16: #{creat_inps.1} parent=5 // pred_fallthru
      _
    %p175 = scmp.le.s32.totalorder 1, %s10
    %p176 = scmp.lt.s32.totalorder %s10, 3
    %p177 = pnand %p175, %p176
    %p178 = pneg %p177
    // Predicated region
    $region25: #{creat_inps.1} parent=5 // pred_check
      _
    $region26: #{creat_inps.1} parent=5 // pred_check_branch
      %180 = sbr.rel (%p177) target = $region28
    $region27: #{creat_inps.1} parent=5 // pred_region
      %s181 = ssub.s32 %s10, 1
      %p182 = scmp.lt.s32.totalorder %s19, 1
      %s183 = scalar_select %p182, %s19, 1
      %p184 = scmp.lt.s32.totalorder %s20, 0
      %s185 = scalar_select %p184, %s20, 0
      %s186 = smul.addr %s183, 2
      %s187 = sadd.s32 %s185, %s186
      %s188 = smul.addr %s187, 8
      %s189 = scalar_lea.vmem %s0, %s188
      %p190 = pneg %p50
      %p191 = pneg %p47
      %p192 = scmp.lt.s32.totalorder %s19, 1
      %s193 = scalar_select %p192, %s19, 1
      %p194 = scmp.lt.s32.totalorder %s20, 0
      %s195 = scalar_select %p194, %s20, 0
      %s196 = smul.addr %s193, 2
      %s197 = sadd.s32 %s195, %s196
      %s198 = smul.addr %s197, 8
      %s199 = scalar_lea.vmem %s1, %s198
      %p200 = pneg %p78
      %p201 = pneg %p75
      %p202 = pneg %p106
      %p203 = pneg %p103
      %p204 = scmp.lt.s32.totalorder %s19, 1
      %s205 = scalar_select %p204, %s19, 1
      %p206 = scmp.lt.s32.totalorder %s20, 0
      %s207 = scalar_select %p206, %s20, 0
      %s208 = smul.addr %s205, 2
      %s209 = sadd.s32 %s207, %s208
      %s210 = smul.addr %s209, 8
      %s211 = scalar_lea.vmem %s2, %s210
      %p212 = pneg %p134
      %p213 = pneg %p131
      %p214 = scmp.lt.s32.totalorder %s19, 1
      %s215 = scalar_select %p214, %s19, 1
      %p216 = scmp.lt.s32.totalorder %s20, 0
      %s217 = scalar_select %p216, %s20, 0
      %s218 = smul.addr %s215, 2
      %s219 = sadd.s32 %s217, %s218
      %s220 = smul.addr %s219, 8
      %s221 = scalar_lea.vmem %s3, %s220
      %p222 = scmp.lt.s32.totalorder %s19, 1
      %s223 = scalar_select %p222, %s19, 1
      %p224 = scmp.lt.s32.totalorder %s20, 0
      %s225 = scalar_select %p224, %s20, 0
      %s226 = smul.addr %s223, 2
      %s227 = sadd.s32 %s225, %s226
      %s228 = smul.addr %s227, 8
      %s229 = scalar_lea.vmem %s0, %s228
      %p230 = scmp.lt.s32.totalorder %s19, 1
      %s231 = scalar_select %p230, %s19, 1
      %p232 = scmp.lt.s32.totalorder %s20, 0
      %s233 = scalar_select %p232, %s20, 0
      %s234 = smul.addr %s231, 2
      %s235 = sadd.s32 %s233, %s234
      %s236 = smul.addr %s235, 8
      %s237 = scalar_lea.vmem %s1, %s236
      %p238 = scmp.lt.s32.totalorder %s19, 1
      %s239 = scalar_select %p238, %s19, 1
      %p240 = scmp.lt.s32.totalorder %s20, 0
      %s241 = scalar_select %p240, %s20, 0
      %s242 = smul.addr %s239, 2
      %s243 = sadd.s32 %s241, %s242
      %s244 = smul.addr %s243, 8
      %s245 = scalar_lea.vmem %s2, %s244
      %p246 = scmp.lt.s32.totalorder %s19, 1
      %s247 = scalar_select %p246, %s19, 1
      %p248 = scmp.lt.s32.totalorder %s20, 0
      %s249 = scalar_select %p248, %s20, 0
      %s250 = smul.addr %s247, 2
      %s251 = sadd.s32 %s249, %s250
      %s252 = smul.addr %s251, 8
      %s253 = scalar_lea.vmem %s3, %s252
      %v254 = vld [vmem:[%s229] sm:$0xff]
      %v255 = vld [vmem:[%s229 + $0x8] sm:$0xff]
      %vm256 = vcmask 64512
      %257 = vst.msk [vmem:[#allocation2] sm:$0xff] %vm256, 0.0
      %258 = vst.msk [vmem:[#allocation2 + $0x8] sm:$0xff] %vm256, 0.0
      %259 = vst.msk [vmem:[#allocation2 + $0x10] sm:$0xff] %vm256, %v254
      %260 = vst.msk [vmem:[#allocation2 + $0x18] sm:$0xff] %vm256, %v255
      %v261 = vld [vmem:[#allocation2 + $0x10] sm:$0xff]
      %v262 = vld [vmem:[#allocation2 + $0x18] sm:$0xff]
      %v263 = vld [vmem:[#allocation2 + $0xf] sm:$0xff]
      %v264 = vld [vmem:[#allocation2 + $0x17] sm:$0xff]
      %v265 = vadd.f32 %v261, %v263
      %v266 = vadd.f32 %v262, %v264
      %267 = vst.msk [vmem:[#allocation2 + $0x10] sm:$0xff] %vm256, %v265
      %268 = vst.msk [vmem:[#allocation2 + $0x18] sm:$0xff] %vm256, %v266
      %v269 = vld [vmem:[#allocation2 + $0x10] sm:$0xff]
      %v270 = vld [vmem:[#allocation2 + $0x18] sm:$0xff]
      %v271 = vld [vmem:[#allocation2 + $0xe] sm:$0xff]
      %v272 = vld [vmem:[#allocation2 + $0x16] sm:$0xff]
      %v273 = vadd.f32 %v269, %v271
      %v274 = vadd.f32 %v270, %v272
      %275 = vst.msk [vmem:[#allocation2 + $0x10] sm:$0xff] %vm256, %v273
      %276 = vst.msk [vmem:[#allocation2 + $0x18] sm:$0xff] %vm256, %v274
      %v277 = vld [vmem:[#allocation2 + $0x10] sm:$0xff]
      %v278 = vld [vmem:[#allocation2 + $0x18] sm:$0xff]
      %v279 = vld [vmem:[#allocation2 + $0xc] sm:$0xff]
      %v280 = vld [vmem:[#allocation2 + $0x14] sm:$0xff]
      %v281 = vadd.f32 %v277, %v279
      %v282 = vadd.f32 %v278, %v280
      %283 = vst.msk [vmem:[#allocation2 + $0x10] sm:$0xff] %vm256, %v281
      %284 = vst.msk [vmem:[#allocation2 + $0x18] sm:$0xff] %vm256, %v282
      %v285 = vld [vmem:[#allocation2 + $0x10] sm:$0xff]
      %v286 = vld [vmem:[#allocation2 + $0x18] sm:$0xff]
      %v287 = vld [vmem:[#allocation2 + $0x8] sm:$0xff]
      %v288 = vadd.f32 %v285, %v287
      %v289 = vadd.f32 %v286, %v285
      %290 = vst.msk [vmem:[#allocation2 + $0x10] sm:$0xff] %vm256, %v288
      %291 = vst.msk [vmem:[#allocation2 + $0x18] sm:$0xff] %vm256, %v289
      %v292 = vld [vmem:[#allocation2 + $0x1f] sm:$0x1]
      %v293 = vlaneseq
      %v294 = vshrl.u32 %v293, 7
      %v295 = vsub.s32 0, %v294
      %v296 = vrot.slane %v292, %v295
      %vm297 = vcmask 58368
      %298 = vst.msk [vmem:[#allocation2 + $0x20] sm:$0x3] %vm297, %v296
      %v299 = vlaneseq
      %v300 = vshrl.u32 %v299, 7
      %v301 = vadd.s32 %v300, 8
      %v302 = vcvt.s32.f32 %v301
      %v303 = vlaneseq
      %v304 = vshrl.u32 %v303, 7
      %v305 = vsub.s32 0, %v304
      %v306 = vrot.slane %v254, %v305
      %v307 = vlaneseq
      %v308 = vshrl.u32 %v307, 7
      %v309 = vsub.s32 7, %v308
      %v310 = vrot.slane %v255, %v309
      %v311 = vmul.f32 %v255, -0.5104427
      %v312 = vadd.f32 %v311, 0.31868857
      %v313 = vmul.f32 %v255, 0.30490384
      %v314 = vadd.f32 %v313, 0.15979578
      %v315 = vmax.f32 %v312, %v314
      %v316 = vsub.f32 %v312, %v315
      %v317 = vmul.f32 %v316, 1.442695
      %v318 = vpow.pop %v317
      %v319 = vsub.f32 %v314, %v315
      %v320 = vmul.f32 %v319, 1.442695
      %v321 = vpow.pop %v320
      %v322 = vadd.f32 %v318, %v321
      %v323 = vrcp.pop %v322
      %v324 = vmul.f32 1.0, %v323
      %v325 = vld [vmem:[#allocation2 + $0x19] sm:$0xff]
      %v326 = vld [vmem:[#allocation2 + $0x16] sm:$0xff]
      %v327 = vsub.f32 1.0, %v302
      %v328 = vmax.f32 %v327, 0.0
      %v329 = vsub.f32 %v302, 14.0
      %v330 = vmax.f32 %v329, 0.0
      %v331 = vsub.f32 %v325, %v326
      %v332 = vmul.f32 %v328, %v306
      %v333 = vadd.f32 %v331, %v332
      %v334 = vmul.f32 %v330, %v310
      %v335 = vadd.f32 %v333, %v334
      %v336 = vmul.f32 %v335, 0.33333334
      %v337 = vmul.f32 %v318, %v324
      %v338 = vmul.f32 %v336, %v337
      %v339 = vadd.f32 %v338, 0.0
      %v340 = vld [vmem:[#allocation2 + $0x1a] sm:$0xff]
      %v341 = vld [vmem:[#allocation2 + $0x15] sm:$0xff]
      %v342 = vsub.f32 2.0, %v302
      %v343 = vmax.f32 %v342, 0.0
      %v344 = vsub.f32 %v302, 13.0
      %v345 = vmax.f32 %v344, 0.0
      %v346 = vsub.f32 %v340, %v341
      %v347 = vmul.f32 %v343, %v306
      %v348 = vadd.f32 %v346, %v347
      %v349 = vmul.f32 %v345, %v310
      %v350 = vadd.f32 %v348, %v349
      %v351 = vmul.f32 %v350, 0.2
      %v352 = vmul.f32 %v321, %v324
      %v353 = vmul.f32 %v351, %v352
      %v354 = vadd.f32 %v339, %v353
      %v355 = vsub.f32 %v255, %v354
      %v356 = vld [vmem:[%s237] sm:$0xff]
      %v357 = vld [vmem:[%s237 + $0x8] sm:$0xf]
      %v358 = vsel %vm256, %v356, 0.0
      %vm359 = vcmask 60416
      %v360 = vsel %vm359, %v357, 0.0
      %v361 = vadd.f32 %v358, %v360
      %v362 = vrot.slane %v361, 4
      %v363 = vadd.f32 %v361, %v362
      %v364 = vrot.slane %v363, 2
      %v365 = vadd.f32 %v363, %v364
      %v366 = vrot.slane %v365, 1
      %v367 = vadd.f32 %v365, %v366
      %v368 = vrcp.pop 12.0
      %v369 = vmul.f32 %v367, %v368
      %370 = vst.msk [vmem:[%s245] sm:$0xff] %vm256, %v355
      %371 = vst.msk [vmem:[%s245 + $0x8] sm:$0xf] %vm359, 0.0
      %372 = vst.msk [vmem:[%s253] sm:$0xff] %vm256, %v354
      %373 = vst.msk [vmem:[%s253 + $0x8] sm:$0xf] %vm359, %v369
      %p374 = scmp.lt.s32.totalorder %s19, 1
      %s375 = scalar_select %p374, %s19, 1
      %p376 = scmp.lt.s32.totalorder %s20, 0
      %s377 = scalar_select %p376, %s20, 0
      %s378 = smul.addr %s375, 2
      %s379 = sadd.s32 %s377, %s378
      %s380 = smul.addr %s379, 8
      %s381 = scalar_lea.vmem %s2, %s380
      %p382 = scmp.lt.s32.totalorder %s19, 1
      %s383 = scalar_select %p382, %s19, 1
      %p384 = scmp.lt.s32.totalorder %s20, 0
      %s385 = scalar_select %p384, %s20, 0
      %s386 = smul.addr %s383, 2
      %s387 = sadd.s32 %s385, %s386
      %s388 = smul.addr %s387, 8
      %s389 = scalar_lea.vmem %s3, %s388
      // Predicated region
      $region29: #{creat_inps.1} parent=27 // pred_check
        %p390 = pneg %p103
      $region30: #{creat_inps.1} parent=27 // pred_check_branch
        %392 = sbr.rel (%p390) target = $region32
      $region31: #{creat_inps.1} parent=27 // pred_region
        _
      $region32: #{creat_inps.1} parent=27 // pred_fallthru
        _
      // Predicated region
      $region33: #{creat_inps.1} parent=27 // pred_check
        %p393 = pneg %p131
      $region34: #{creat_inps.1} parent=27 // pred_check_branch
        %395 = sbr.rel (%p393) target = $region36
      $region35: #{creat_inps.1} parent=27 // pred_region
        _
      $region36: #{creat_inps.1} parent=27 // pred_fallthru
        _
    $region28: #{creat_inps.1} parent=5 // pred_fallthru
      _
    %p396 = scmp.le.s32.totalorder 2, %s10
    // Predicated region
    $region37: #{creat_inps.1} parent=5 // pred_check
      %p397 = pneg %p396
    $region38: #{creat_inps.1} parent=5 // pred_check_branch
      %399 = sbr.rel (%p397) target = $region40
    $region39: #{creat_inps.1} parent=5 // pred_region
      %s400 = ssub.s32 %s10, 2
      // Predicated region
      $region41: #{creat_inps.1} parent=39 // pred_check
        %p401 = pneg %p109
      $region42: #{creat_inps.1} parent=39 // pred_check_branch
        %403 = sbr.rel (%p401) target = $region44
      $region43: #{creat_inps.1} parent=39 // pred_region
        %p404 = scmp.lt.s32.totalorder %s21, 1
        %s405 = scalar_select %p404, %s21, 1
        %p406 = scmp.lt.s32.totalorder %s22, 0
        %s407 = scalar_select %p406, %s22, 0
        %s408 = smul.addr %s405, 2
        %s409 = sadd.s32 %s407, %s408
        %s410 = smul.addr %s409, 8
        %s411 = scalar_lea.vmem %s2, %s410
      $region44: #{creat_inps.1} parent=39 // pred_fallthru
        _
      // Predicated region
      $region45: #{creat_inps.1} parent=39 // pred_check
        %p412 = pneg %p137
      $region46: #{creat_inps.1} parent=39 // pred_check_branch
        %414 = sbr.rel (%p412) target = $region48
      $region47: #{creat_inps.1} parent=39 // pred_region
        %p415 = scmp.lt.s32.totalorder %s21, 1
        %s416 = scalar_select %p415, %s21, 1
        %p417 = scmp.lt.s32.totalorder %s22, 0
        %s418 = scalar_select %p417, %s22, 0
        %s419 = smul.addr %s416, 2
        %s420 = sadd.s32 %s418, %s419
        %s421 = smul.addr %s420, 8
        %s422 = scalar_lea.vmem %s3, %s421
      $region48: #{creat_inps.1} parent=39 // pred_fallthru
        _
    $region40: #{creat_inps.1} parent=5 // pred_fallthru
      _
  $region6: #{creat_inps.1} parent=0 // loop_footer
    %s14 = sadd.s32 1, %s10
  $region7: #{creat_inps.1} parent=0 // loop_footer_branch
    %9 = sbr.rel target = $region3
  $region8: #{creat_inps.1} parent=0 // loop_exit
    _

</llo_original>
